<compile_context>
chip_gen: v5e
topology: v5e:2x2
jax: 0.10.0
libtpu: 0.0.40
codegen_flags: <defaults>
</compile_context>

<pallas_src>
import functools

import jax
import jax.numpy as jnp
from jax.experimental import pallas as pl
from jax.experimental.pallas import tpu as pltpu

BN_EPS = 1e-5


def _round_up(x, m):
    return ((x + m - 1) // m) * m


# ---------------------------------------------------------------------------
# Kernels
# ---------------------------------------------------------------------------
def _stats_kernel(p_ref, w_ref, g_ref, b_ref, scale_ref, shift_ref, *, m_total):
    """Pass 1: conv tile -> accumulate sum / sumsq; finalize to (scale, shift).

    scale_ref / shift_ref double as the f32 accumulators (sum, sum of squares)
    and are converted in place on the last grid step:
        scale = gamma * rsqrt(var + eps)
        shift = beta  - mean * scale
    """
    i = pl.program_id(0)

    @pl.when(i == 0)
    def _():
        scale_ref[...] = jnp.zeros_like(scale_ref)
        shift_ref[...] = jnp.zeros_like(shift_ref)

    h = jnp.dot(p_ref[...], w_ref[...], preferred_element_type=jnp.float32)
    scale_ref[...] += jnp.sum(h, axis=0, keepdims=True)
    shift_ref[...] += jnp.sum(h * h, axis=0, keepdims=True)

    @pl.when(i == pl.num_programs(0) - 1)
    def _():
        inv_m = 1.0 / m_total
        mean = scale_ref[...] * inv_m
        var = jnp.maximum(shift_ref[...] * inv_m - mean * mean, 0.0)
        sc = g_ref[...] * jax.lax.rsqrt(var + BN_EPS)
        scale_ref[...] = sc
        shift_ref[...] = b_ref[...] - mean * sc


def _apply_kernel(p_ref, w_ref, scale_ref, shift_ref, o_ref):
    """Pass 2: conv tile -> single FMA (scale/shift) -> ReLU -> store."""
    h = jnp.dot(p_ref[...], w_ref[...], preferred_element_type=jnp.float32)
    o_ref[...] = jnp.maximum(h * scale_ref[...] + shift_ref[...],
                             0.0).astype(o_ref.dtype)


# ---------------------------------------------------------------------------
# Wrapper
# ---------------------------------------------------------------------------
def _im2col_down(x):
    """x: (N, C, H, W).  Conv2d(k=4, s=2, p=1) patches -> (N*OH*OW, C*16).

    K is ordered (ci, kh, kw) to match weight.reshape(C_out, -1).
    (Handles odd H/W exactly like PyTorch's output-size formula.)
    """
    n, c, h, w = x.shape
    oh, ow = h // 2, w // 2
    xp = jnp.pad(x, ((0, 0), (0, 0), (1, 1), (1, 1)))
    cols = [xp[:, :, kh:kh + 2 * oh:2, kw:kw + 2 * ow:2]
            for kh in range(4) for kw in range(4)]        # each (N, C, OH, OW)
    p = jnp.stack(cols, axis=-1)                          # (N, C, OH, OW, 16)
    p = jnp.transpose(p, (0, 2, 3, 1, 4))                 # (N, OH, OW, C, 16)
    return p.reshape(n * oh * ow, c * 16), (n, oh, ow)


def cbr_forward(x, weight, bias, gamma, beta, *, tile_m=512):
    """Fused Conv2d(4,2,1) + BatchNorm2d(train mode) + ReLU.  NCHW in / out.

    `bias` is accepted for interface parity but is mathematically a no-op
    under train-mode BN (cancelled by the mean subtraction), so it is unused.
    """
    del bias  # cancelled exactly by the batch-mean subtraction
    n, c_in, h, w = x.shape
    c_out = weight.shape[0]
    oh, ow = h // 2, w // 2

    # bf16 matmul operands (MXU accumulates in f32); BN math stays in f32.
    xb = x.astype(jnp.bfloat16)
    wb = weight.astype(jnp.bfloat16)

    patches, _ = _im2col_down(xb)                         # (M, K) bf16
    m, k = patches.shape

    # Lane-dense channel dimension: pad C_out up to a multiple of 128.
    cpad = max(128, _round_up(c_out, 128))
    w2d = jnp.zeros((k, cpad), jnp.bfloat16).at[:, :c_out].set(
        wb.reshape(c_out, k).T)
    g2d = jnp.zeros((1, cpad), jnp.float32).at[:, :c_out].set(
        gamma.astype(jnp.float32).reshape(1, c_out))
    b2d = jnp.zeros((1, cpad), jnp.float32).at[:, :c_out].set(
        beta.astype(jnp.float32).reshape(1, c_out))

    # Row tiling: zero-padded rows contribute nothing to sum / sumsq (h == 0),
    # and mean/var are divided by the true M, so stats stay exact.
    tm = tile_m if m >= tile_m else _round_up(m, 16)
    m_pad = _round_up(m, tm)
    if m_pad != m:
        patches = jnp.pad(patches, ((0, m_pad - m), (0, 0)))
    n_tiles = m_pad // tm

    # ---- Pass 1: batch statistics -> fused (scale, shift) ------------------
    scale, shift = pl.pallas_call(
        functools.partial(_stats_kernel, m_total=float(m)),
        out_shape=(jax.ShapeDtypeStruct((1, cpad), jnp.float32),
                   jax.ShapeDtypeStruct((1, cpad), jnp.float32)),
        grid=(n_tiles,),
        in_specs=[
            pl.BlockSpec((tm, k), lambda i: (i, 0)),
            pl.BlockSpec((k, cpad), lambda i: (0, 0)),
            pl.BlockSpec((1, cpad), lambda i: (0, 0)),
            pl.BlockSpec((1, cpad), lambda i: (0, 0)),
        ],
        out_specs=(pl.BlockSpec((1, cpad), lambda i: (0, 0)),
                   pl.BlockSpec((1, cpad), lambda i: (0, 0))),
        compiler_params=pltpu.CompilerParams(
            dimension_semantics=("arbitrary",)),
    )(patches, w2d, g2d, b2d)

    # ---- Pass 2: normalize + affine + ReLU per tile -------------------------
    out_pad = pl.pallas_call(
        _apply_kernel,
        out_shape=jax.ShapeDtypeStruct((m_pad, cpad), jnp.float32),
        grid=(n_tiles,),
        in_specs=[
            pl.BlockSpec((tm, k), lambda i: (i, 0)),
            pl.BlockSpec((k, cpad), lambda i: (0, 0)),
            pl.BlockSpec((1, cpad), lambda i: (0, 0)),
            pl.BlockSpec((1, cpad), lambda i: (0, 0)),
        ],
        out_specs=pl.BlockSpec((tm, cpad), lambda i: (i, 0)),
        compiler_params=pltpu.CompilerParams(
            dimension_semantics=("parallel",)),
    )(patches, w2d, scale, shift)

    # Slice off padding, restore NCHW (kept for PyTorch interface parity;
    # consumers that accept NHWC could skip this transpose).
    out = out_pad[:m, :c_out].reshape(n, oh, ow, c_out).transpose(0, 3, 1, 2)
    return out


# ---------------------------------------------------------------------------
# Self-test
# ---------------------------------------------------------------------------
if __name__ == "__main__":
    # Shapes consistent with CBR(ch0=4, ch1=8, sample='down')
    N, CH0, CH1, H, W = 2, 4, 8, 16, 16

    key = jax.random.PRNGKey(0)
    kx, kw, kb, kg, kbe = jax.random.split(key, 5)

    x = jax.random.normal(kx, (N, CH0, H, W), dtype=jnp.float32)

    fan_in = CH0 * 4 * 4
    bound = 1.0 / (fan_in ** 0.5)
    weight = jax.random.uniform(kw, (CH1, CH0, 4, 4), jnp.float32, -bound, bound)
    bias = jax.random.uniform(kb, (CH1,), jnp.float32, -bound, bound)
    gamma = 1.0 + 0.1 * jax.random.normal(kg, (CH1,), jnp.float32)
    beta = 0.1 * jax.random.normal(kbe, (CH1,), jnp.float32)

    out = cbr_forward(x, weight, bias, gamma, beta)
    jax.block_until_ready(out)
    assert out.shape == (N, CH1, H // 2, W // 2)

    # Reference on the same bf16-rounded operands the kernel consumes
    # (bias included here to demonstrate its exact cancellation under BN).
    xr = x.astype(jnp.bfloat16).astype(jnp.float32)
    wr = weight.astype(jnp.bfloat16).astype(jnp.float32)
    ref = jax.lax.conv_general_dilated(
        xr, wr, window_strides=(2, 2), padding=[(1, 1), (1, 1)],
        dimension_numbers=("NCHW", "OIHW", "NCHW"),
        precision=jax.lax.Precision.HIGHEST) + bias.reshape(1, CH1, 1, 1)
    mu = ref.mean(axis=(0, 2, 3), keepdims=True)
    va = ((ref - mu) ** 2).mean(axis=(0, 2, 3), keepdims=True)
    ref = (ref - mu) / jnp.sqrt(va + BN_EPS)
    ref = ref * gamma.reshape(1, CH1, 1, 1) + beta.reshape(1, CH1, 1, 1)
    ref = jnp.maximum(ref, 0.0)

    err = float(jnp.max(jnp.abs(out - ref)))
    assert err < 2e-3, f"max abs err {err}"

    print("KERNEL_OK")
</pallas_src>

<mosaic_0001>
module attributes {stable_mosaic.version = 11 : i64} {
  func.func @_stats_kernel(%arg0: i32, %arg1: memref<128x64xbf16, #tpu.memory_space<vmem>>, %arg2: memref<64x128xbf16, #tpu.memory_space<vmem>>, %arg3: memref<1x128xf32, #tpu.memory_space<vmem>>, %arg4: memref<1x128xf32, #tpu.memory_space<vmem>>, %arg5: memref<1x128xf32, #tpu.memory_space<vmem>>, %arg6: memref<1x128xf32, #tpu.memory_space<vmem>>) attributes {dimension_semantics = [#tpu.dimension_semantics<arbitrary>], iteration_bounds = array<i64: 1>, scalar_prefetch = 0 : i64, scratch_operands = 0 : i64, tpu.core_type = #tpu.core_type<tc>, window_params = [{transform_indices = @transform_0, window_bounds = array<i64: 128, 64>}, {pipeline_mode = #tpu.pipeline_mode<synchronous>, transform_indices = @transform_1, window_bounds = array<i64: 64, 128>}, {pipeline_mode = #tpu.pipeline_mode<synchronous>, transform_indices = @transform_2, window_bounds = array<i64: 1, 128>}, {pipeline_mode = #tpu.pipeline_mode<synchronous>, transform_indices = @transform_3, window_bounds = array<i64: 1, 128>}, {pipeline_mode = #tpu.pipeline_mode<synchronous>, transform_indices = @transform_4, window_bounds = array<i64: 1, 128>}, {pipeline_mode = #tpu.pipeline_mode<synchronous>, transform_indices = @transform_5, window_bounds = array<i64: 1, 128>}]} {
    %c0_i32 = arith.constant 0 : i32
    %0 = arith.cmpi eq, %arg0, %c0_i32 : i32
    %1 = arith.extui %0 : i1 to i32
    %c0_i32_0 = arith.constant 0 : i32
    %2 = arith.cmpi ne, %1, %c0_i32_0 : i32
    scf.if %2 {
      %cst_16 = arith.constant 0.000000e+00 : f32
      %20 = vector.broadcast %cst_16 : f32 to vector<1x128xf32>
      %c0_17 = arith.constant 0 : index
      %c0_18 = arith.constant 0 : index
      %21 = vector.load %arg5[%c0_17, %c0_18] : memref<1x128xf32, #tpu.memory_space<vmem>>, vector<1x128xf32>
      tpu.vector_store %arg5[%c0_17, %c0_18], %20 {strides = array<i32>} : memref<1x128xf32, #tpu.memory_space<vmem>>, vector<1x128xf32>,
      %cst_19 = arith.constant 0.000000e+00 : f32
      %22 = vector.broadcast %cst_19 : f32 to vector<1x128xf32>
      %c0_20 = arith.constant 0 : index
      %c0_21 = arith.constant 0 : index
      %23 = vector.load %arg6[%c0_20, %c0_21] : memref<1x128xf32, #tpu.memory_space<vmem>>, vector<1x128xf32>
      tpu.vector_store %arg6[%c0_20, %c0_21], %22 {strides = array<i32>} : memref<1x128xf32, #tpu.memory_space<vmem>>, vector<1x128xf32>,
    } else {
    }
    %c0 = arith.constant 0 : index
    %c0_1 = arith.constant 0 : index
    %3 = vector.load %arg1[%c0, %c0_1] : memref<128x64xbf16, #tpu.memory_space<vmem>>, vector<128x64xbf16>
    %c0_2 = arith.constant 0 : index
    %c0_3 = arith.constant 0 : index
    %4 = vector.load %arg2[%c0_2, %c0_3] : memref<64x128xbf16, #tpu.memory_space<vmem>>, vector<64x128xbf16>
    %cst = arith.constant dense<0.000000e+00> : vector<128x128xf32>
    %5 = tpu.matmul %3, %4, %cst {dimension_numbers = #tpu.dot_dimension_numbers<[1], [0], [0], [1], [0, 0, 1, 1], [], []>} : vector<128x64xbf16>, vector<64x128xbf16>, vector<128x128xf32> -> vector<128x128xf32>
    %c0_4 = arith.constant 0 : index
    %c0_5 = arith.constant 0 : index
    %6 = vector.load %arg5[%c0_4, %c0_5] : memref<1x128xf32, #tpu.memory_space<vmem>>, vector<1x128xf32>
    %cst_6 = arith.constant dense<0.000000e+00> : vector<128xf32>
    %7 = vector.multi_reduction <add>, %5, %cst_6 [0] : vector<128x128xf32> to vector<128xf32>
    %8 = vector.shape_cast %7 : vector<128xf32> to vector<1x128xf32>
    %9 = arith.addf %6, %8 : vector<1x128xf32>
    %c0_7 = arith.constant 0 : index
    %c0_8 = arith.constant 0 : index
    %10 = vector.load %arg5[%c0_7, %c0_8] : memref<1x128xf32, #tpu.memory_space<vmem>>, vector<1x128xf32>
    tpu.vector_store %arg5[%c0_7, %c0_8], %9 {strides = array<i32>} : memref<1x128xf32, #tpu.memory_space<vmem>>, vector<1x128xf32>,
    %c0_9 = arith.constant 0 : index
    %c0_10 = arith.constant 0 : index
    %11 = vector.load %arg6[%c0_9, %c0_10] : memref<1x128xf32, #tpu.memory_space<vmem>>, vector<1x128xf32>
    %12 = arith.mulf %5, %5 : vector<128x128xf32>
    %cst_11 = arith.constant dense<0.000000e+00> : vector<128xf32>
    %13 = vector.multi_reduction <add>, %12, %cst_11 [0] : vector<128x128xf32> to vector<128xf32>
    %14 = vector.shape_cast %13 : vector<128xf32> to vector<1x128xf32>
    %15 = arith.addf %11, %14 : vector<1x128xf32>
    %c0_12 = arith.constant 0 : index
    %c0_13 = arith.constant 0 : index
    %16 = vector.load %arg6[%c0_12, %c0_13] : memref<1x128xf32, #tpu.memory_space<vmem>>, vector<1x128xf32>
    tpu.vector_store %arg6[%c0_12, %c0_13], %15 {strides = array<i32>} : memref<1x128xf32, #tpu.memory_space<vmem>>, vector<1x128xf32>,
    %c0_i32_14 = arith.constant 0 : i32
    %17 = arith.cmpi eq, %arg0, %c0_i32_14 : i32
    %18 = arith.extui %17 : i1 to i32
    %c0_i32_15 = arith.constant 0 : i32
    %19 = arith.cmpi ne, %18, %c0_i32_15 : i32
    scf.if %19 {
      %c0_16 = arith.constant 0 : index
      %c0_17 = arith.constant 0 : index
      %20 = vector.load %arg5[%c0_16, %c0_17] : memref<1x128xf32, #tpu.memory_space<vmem>>, vector<1x128xf32>
      %cst_18 = arith.constant 7.812500e-03 : f32
      %21 = vector.broadcast %cst_18 : f32 to vector<1x128xf32>
      %22 = arith.mulf %20, %21 : vector<1x128xf32>
      %c0_19 = arith.constant 0 : index
      %c0_20 = arith.constant 0 : index
      %23 = vector.load %arg6[%c0_19, %c0_20] : memref<1x128xf32, #tpu.memory_space<vmem>>, vector<1x128xf32>
      %cst_21 = arith.constant 7.812500e-03 : f32
      %24 = vector.broadcast %cst_21 : f32 to vector<1x128xf32>
      %25 = arith.mulf %23, %24 : vector<1x128xf32>
      %26 = arith.mulf %22, %22 : vector<1x128xf32>
      %27 = arith.subf %25, %26 : vector<1x128xf32>
      %cst_22 = arith.constant 0.000000e+00 : f32
      %28 = vector.broadcast %cst_22 : f32 to vector<1x128xf32>
      %29 = arith.maximumf %27, %28 : vector<1x128xf32>
      %c0_23 = arith.constant 0 : index
      %c0_24 = arith.constant 0 : index
      %30 = vector.load %arg3[%c0_23, %c0_24] : memref<1x128xf32, #tpu.memory_space<vmem>>, vector<1x128xf32>
      %cst_25 = arith.constant 9.99999974E-6 : f32
      %31 = vector.broadcast %cst_25 : f32 to vector<1x128xf32>
      %32 = arith.addf %29, %31 : vector<1x128xf32>
      %33 = math.rsqrt %32 : vector<1x128xf32>
      %34 = arith.mulf %30, %33 : vector<1x128xf32>
      %c0_26 = arith.constant 0 : index
      %c0_27 = arith.constant 0 : index
      %35 = vector.load %arg5[%c0_26, %c0_27] : memref<1x128xf32, #tpu.memory_space<vmem>>, vector<1x128xf32>
      tpu.vector_store %arg5[%c0_26, %c0_27], %34 {strides = array<i32>} : memref<1x128xf32, #tpu.memory_space<vmem>>, vector<1x128xf32>,
      %c0_28 = arith.constant 0 : index
      %c0_29 = arith.constant 0 : index
      %36 = vector.load %arg4[%c0_28, %c0_29] : memref<1x128xf32, #tpu.memory_space<vmem>>, vector<1x128xf32>
      %37 = arith.mulf %22, %34 : vector<1x128xf32>
      %38 = arith.subf %36, %37 : vector<1x128xf32>
      %c0_30 = arith.constant 0 : index
      %c0_31 = arith.constant 0 : index
      %39 = vector.load %arg6[%c0_30, %c0_31] : memref<1x128xf32, #tpu.memory_space<vmem>>, vector<1x128xf32>
      tpu.vector_store %arg6[%c0_30, %c0_31], %38 {strides = array<i32>} : memref<1x128xf32, #tpu.memory_space<vmem>>, vector<1x128xf32>,
    } else {
    }
    return
  }
  func.func @transform_0(%arg0: i32) -> (i32, i32) {
    %c0_i32 = arith.constant 0 : i32
    %c0_i32_0 = arith.constant 0 : i32
    return %arg0, %c0_i32 : i32, i32
  }
  func.func @transform_1(%arg0: i32) -> (i32, i32) {
    %c0_i32 = arith.constant 0 : i32
    %c0_i32_0 = arith.constant 0 : i32
    %c0_i32_1 = arith.constant 0 : i32
    return %c0_i32, %c0_i32_0 : i32, i32
  }
  func.func @transform_2(%arg0: i32) -> (i32, i32) {
    %c0_i32 = arith.constant 0 : i32
    %c0_i32_0 = arith.constant 0 : i32
    %c0_i32_1 = arith.constant 0 : i32
    return %c0_i32, %c0_i32_0 : i32, i32
  }
  func.func @transform_3(%arg0: i32) -> (i32, i32) {
    %c0_i32 = arith.constant 0 : i32
    %c0_i32_0 = arith.constant 0 : i32
    %c0_i32_1 = arith.constant 0 : i32
    return %c0_i32, %c0_i32_0 : i32, i32
  }
  func.func @transform_4(%arg0: i32) -> (i32, i32) {
    %c0_i32 = arith.constant 0 : i32
    %c0_i32_0 = arith.constant 0 : i32
    %c0_i32_1 = arith.constant 0 : i32
    return %c0_i32, %c0_i32_0 : i32, i32
  }
  func.func @transform_5(%arg0: i32) -> (i32, i32) {
    %c0_i32 = arith.constant 0 : i32
    %c0_i32_0 = arith.constant 0 : i32
    %c0_i32_1 = arith.constant 0 : i32
    return %c0_i32, %c0_i32_0 : i32, i32
  }
}

</mosaic_0001>

<llo_original>
// kernel: tpu_custom_call.1
$region0: #{tpu_custom_call.1}
  #allocation0 [shape = 'u32[]', space=smem, size = 0x4, offset = 0x4, fixed_abs, tag = 'smem constant byte address 0x4 - core index']
  #allocation1 [shape = 'u32[72,128]{1,0:T(1,128)}', space=vmem, size = 0x9000, scoped, tag = 'internal scratch']
  %s0 = inlined_call_operand.vmem [shape: bf16[128,64], index: 0, kind: input, shape index: {}]
  %s1 = inlined_call_operand.vmem [shape: bf16[64,128], index: 1, kind: input, shape index: {}]
  %s2 = inlined_call_operand.vmem [shape: f32[1,128], index: 2, kind: input, shape index: {}]
  %s3 = inlined_call_operand.vmem [shape: f32[1,128], index: 3, kind: input, shape index: {}]
  %s4 = inlined_call_operand.hbm [shape: f32[1,128], index: 4, kind: output, shape index: {0}]
  %s5 = inlined_call_operand.hbm [shape: f32[1,128], index: 5, kind: output, shape index: {1}]
  %6 = xla_tuple %s4, %s5
  %s7 = sld [smem:[#allocation0]]
  $region42: #{tpu_custom_call.1} parent=0
    _
  %s9 = ssub.s32 1, %s7
  %s10 = scalar_select 0, %s9, %s7
  $region1: #{tpu_custom_call.1} parent=0
    #allocation2 [shape = 'u8[512]{0}', space=vmem, size = 0x400, scoped, tag = 'output window, operand 0, single buffered']
    #allocation3 [shape = 's32[1]{0}', space=sflag, size = 0x4, scoped, tag = 'scoped memory for tpu_custom_call.1']
    #allocation4 [shape = 'u8[512]{0}', space=vmem, size = 0x400, scoped, tag = 'output window, operand 1, single buffered']
    #allocation5 [shape = 's32[1]{0}', space=sflag, size = 0x4, scoped, tag = 'scoped memory for tpu_custom_call.1']
    %11 = vsyncpa [#allocation3], 0
    %12 = vsyncpa [#allocation5], 0
    // Predicated region
    $region2: #{tpu_custom_call.1} parent=1 // pred_check
      _
    $region3: #{tpu_custom_call.1} parent=1 // pred_check_branch
      %14 = sbr.rel (0) target = $region5
    $region4: #{tpu_custom_call.1} parent=1 // pred_region
      _
    $region5: #{tpu_custom_call.1} parent=1 // pred_fallthru
      _
    // Predicated region
    $region6: #{tpu_custom_call.1} parent=1 // pred_check
      _
    $region7: #{tpu_custom_call.1} parent=1 // pred_check_branch
      %16 = sbr.rel (0) target = $region9
    $region8: #{tpu_custom_call.1} parent=1 // pred_region
      _
    $region9: #{tpu_custom_call.1} parent=1 // pred_fallthru
      _
    // Predicated region
    $region10: #{tpu_custom_call.1} parent=1 // pred_check
      _
    $region11: #{tpu_custom_call.1} parent=1 // pred_check_branch
      %18 = sbr.rel (0) target = $region13
    $region12: #{tpu_custom_call.1} parent=1 // pred_region
      _
    $region13: #{tpu_custom_call.1} parent=1 // pred_fallthru
      _
    // Predicated region
    $region14: #{tpu_custom_call.1} parent=1 // pred_check
      _
    $region15: #{tpu_custom_call.1} parent=1 // pred_check_branch
      %20 = sbr.rel (0) target = $region17
    $region16: #{tpu_custom_call.1} parent=1 // pred_region
      _
    $region17: #{tpu_custom_call.1} parent=1 // pred_fallthru
      _
    %p22 = scmp.eq.s32.totalorder 0, 0
    // Predicated region
    $region18: #{tpu_custom_call.1} parent=1 // pred_check
      %p23 = pneg %p22
    $region19: #{tpu_custom_call.1} parent=1 // pred_check_branch
      %25 = sbr.rel (%p23) target = $region21
    $region20: #{tpu_custom_call.1} parent=1 // pred_region
      %26 = vst [vmem:[#allocation2] sm:$0x1] 0.0
      %27 = vst [vmem:[#allocation4] sm:$0x1] 0.0
    $region21: #{tpu_custom_call.1} parent=1 // pred_fallthru
      _
    %v28 = vld [vmem:[%s0] sm:$0xf]
    %v29 = vld [vmem:[%s0 + $0x4] sm:$0xf]
    %v30 = vld [vmem:[%s0 + $0x8] sm:$0xf]
    %v31 = vld [vmem:[%s0 + $0xc] sm:$0xf]
    %v32 = vld [vmem:[%s0 + $0x10] sm:$0xf]
    %v33 = vld [vmem:[%s0 + $0x14] sm:$0xf]
    %v34 = vld [vmem:[%s0 + $0x18] sm:$0xf]
    %v35 = vld [vmem:[%s0 + $0x1c] sm:$0xf]
    %v36 = vld [vmem:[%s0 + $0x20] sm:$0xf]
    %v37 = vld [vmem:[%s0 + $0x24] sm:$0xf]
    %v38 = vld [vmem:[%s0 + $0x28] sm:$0xf]
    %v39 = vld [vmem:[%s0 + $0x2c] sm:$0xf]
    %v40 = vld [vmem:[%s0 + $0x30] sm:$0xf]
    %v41 = vld [vmem:[%s0 + $0x34] sm:$0xf]
    %v42 = vld [vmem:[%s0 + $0x38] sm:$0xf]
    %v43 = vld [vmem:[%s0 + $0x3c] sm:$0xf]
    %v44 = vld [vmem:[%s1] sm:$0xf]
    %v45 = vld [vmem:[%s1 + $0x4] sm:$0xf]
    %v46 = vld [vmem:[%s1 + $0x8] sm:$0xf]
    %v47 = vld [vmem:[%s1 + $0xc] sm:$0xf]
    %v48 = vld [vmem:[%s1 + $0x10] sm:$0xf]
    %v49 = vld [vmem:[%s1 + $0x14] sm:$0xf]
    %v50 = vld [vmem:[%s1 + $0x18] sm:$0xf]
    %v51 = vld [vmem:[%s1 + $0x1c] sm:$0xf]
    %v68 = vunpack.c.l.b16 %v28
    %v69 = vunpack.c.l.b16 %v29
    %v70 = vunpack.c.l.b16 %v30
    %v71 = vunpack.c.l.b16 %v31
    %v72 = vunpack.c.l.b16 %v32
    %v73 = vunpack.c.l.b16 %v33
    %v74 = vunpack.c.l.b16 %v34
    %v75 = vunpack.c.l.b16 %v35
    %v76 = vunpack.c.l.b16 %v36
    %v77 = vunpack.c.l.b16 %v37
    %v78 = vunpack.c.l.b16 %v38
    %v79 = vunpack.c.l.b16 %v39
    %v80 = vunpack.c.l.b16 %v40
    %v81 = vunpack.c.l.b16 %v41
    %v82 = vunpack.c.l.b16 %v42
    %v83 = vunpack.c.l.b16 %v43
    %v84 = vpack.c.b16 %v69, %v68
    %v85 = vpack.c.b16 %v71, %v70
    %v86 = vpack.c.b16 %v73, %v72
    %v87 = vpack.c.b16 %v75, %v74
    %v88 = vpack.c.b16 %v77, %v76
    %v89 = vpack.c.b16 %v79, %v78
    %v90 = vpack.c.b16 %v81, %v80
    %v91 = vpack.c.b16 %v83, %v82
    %v100 = vunpack.c.l.b16 %v44
    %v101 = vunpack.c.l.b16 %v45
    %v102 = vunpack.c.l.b16 %v46
    %v103 = vunpack.c.l.b16 %v47
    %v104 = vunpack.c.l.b16 %v48
    %v105 = vunpack.c.l.b16 %v49
    %v106 = vunpack.c.l.b16 %v50
    %v107 = vunpack.c.l.b16 %v51
    %v108 = vpack.c.b16 %v101, %v100
    %v109 = vpack.c.b16 %v103, %v102
    %v110 = vpack.c.b16 %v105, %v104
    %v111 = vpack.c.b16 %v107, %v106
    %vm116 = vcmask 523264
    %v118 = vsel %vm116, %v84, 0
    %v121 = vsel %vm116, %v85, 0
    %v124 = vsel %vm116, %v86, 0
    %v127 = vsel %vm116, %v87, 0
    %v130 = vsel %vm116, %v88, 0
    %v133 = vsel %vm116, %v89, 0
    %v136 = vsel %vm116, %v90, 0
    %v139 = vsel %vm116, %v91, 0
    %141 = vmatpush.bf16.msra.mxu0 0
    %142 = vmatpush.bf16.msra.mxu0 0
    %143 = vmatpush.bf16.msra.mxu0 0
    %144 = vmatpush.bf16.msra.mxu0 0
    %145 = vmatpush.bf16.msra.mxu0 %v111
    %146 = vmatpush.bf16.msra.mxu0 %v110
    %147 = vmatpush.bf16.msra.mxu0 %v109
    %148 = vmatpush.bf16.msra.mxu0 %v108
    %149 = vmatmul.bf16.gmra.mxu0 %v118
    %v150 = vpop.f32.mrf.mxu0
    %v151 = vadd.f32 0.0, %v150
    %v152 = vpop.f32.mrf.mxu0
    %v153 = vadd.f32 0.0, %v152
    %154 = vmatmul.bf16.gmra.mxu0 %v121
    %v155 = vpop.f32.mrf.mxu0
    %v156 = vadd.f32 0.0, %v155
    %v157 = vpop.f32.mrf.mxu0
    %v158 = vadd.f32 0.0, %v157
    %159 = vmatmul.bf16.gmra.mxu0 %v124
    %v160 = vpop.f32.mrf.mxu0
    %v161 = vadd.f32 0.0, %v160
    %v162 = vpop.f32.mrf.mxu0
    %v163 = vadd.f32 0.0, %v162
    %164 = vmatmul.bf16.gmra.mxu0 %v127
    %v165 = vpop.f32.mrf.mxu0
    %v166 = vadd.f32 0.0, %v165
    %v167 = vpop.f32.mrf.mxu0
    %v168 = vadd.f32 0.0, %v167
    %169 = vmatmul.bf16.gmra.mxu0 %v130
    %v170 = vpop.f32.mrf.mxu0
    %v171 = vadd.f32 0.0, %v170
    %v172 = vpop.f32.mrf.mxu0
    %v173 = vadd.f32 0.0, %v172
    %174 = vmatmul.bf16.gmra.mxu0 %v133
    %v175 = vpop.f32.mrf.mxu0
    %v176 = vadd.f32 0.0, %v175
    %v177 = vpop.f32.mrf.mxu0
    %v178 = vadd.f32 0.0, %v177
    %179 = vmatmul.bf16.gmra.mxu0 %v136
    %v180 = vpop.f32.mrf.mxu0
    %v181 = vadd.f32 0.0, %v180
    %v182 = vpop.f32.mrf.mxu0
    %v183 = vadd.f32 0.0, %v182
    %184 = vmatmul.bf16.gmra.mxu0 %v139
    %v185 = vpop.f32.mrf.mxu0
    %v186 = vadd.f32 0.0, %v185
    %v187 = vpop.f32.mrf.mxu0
    %v188 = vadd.f32 0.0, %v187
    %189 = vdwg.mxu0
    %v190 = vld [vmem:[#allocation2] sm:$0x1]
    %v191 = vadd.f32 %v151, %v153
    %v192 = vadd.f32 %v191, %v156
    %v193 = vadd.f32 %v192, %v158
    %v194 = vadd.f32 %v193, %v161
    %v195 = vadd.f32 %v194, %v163
    %v196 = vadd.f32 %v195, %v166
    %v197 = vadd.f32 %v196, %v168
    %v198 = vadd.f32 %v197, %v171
    %v199 = vadd.f32 %v198, %v173
    %v200 = vadd.f32 %v199, %v176
    %v201 = vadd.f32 %v200, %v178
    %v202 = vadd.f32 %v201, %v181
    %v203 = vadd.f32 %v202, %v183
    %v204 = vadd.f32 %v203, %v186
    %v205 = vadd.f32 %v204, %v188
    %v206 = vrot.slane %v205, 4
    %v207 = vadd.f32 %v205, %v206
    %v208 = vrot.slane %v207, 2
    %v209 = vadd.f32 %v207, %v208
    %v210 = vrot.slane %v209, 1
    %v211 = vadd.f32 %v209, %v210
    %v212 = vadd.f32 %v190, %v211
    %213 = vst [vmem:[#allocation2] sm:$0x1] %v212
    %v214 = vld [vmem:[#allocation4] sm:$0x1]
    %v215 = vmul.f32 %v151, %v151
    %v216 = vmul.f32 %v153, %v153
    %v217 = vmul.f32 %v156, %v156
    %v218 = vmul.f32 %v158, %v158
    %v219 = vmul.f32 %v161, %v161
    %v220 = vmul.f32 %v163, %v163
    %v221 = vmul.f32 %v166, %v166
    %v222 = vmul.f32 %v168, %v168
    %v223 = vmul.f32 %v171, %v171
    %v224 = vmul.f32 %v173, %v173
    %v225 = vmul.f32 %v176, %v176
    %v226 = vmul.f32 %v178, %v178
    %v227 = vmul.f32 %v181, %v181
    %v228 = vmul.f32 %v183, %v183
    %v229 = vmul.f32 %v186, %v186
    %v230 = vmul.f32 %v188, %v188
    %v231 = vadd.f32 %v215, %v216
    %v232 = vadd.f32 %v231, %v217
    %v233 = vadd.f32 %v232, %v218
    %v234 = vadd.f32 %v233, %v219
    %v235 = vadd.f32 %v234, %v220
    %v236 = vadd.f32 %v235, %v221
    %v237 = vadd.f32 %v236, %v222
    %v238 = vadd.f32 %v237, %v223
    %v239 = vadd.f32 %v238, %v224
    %v240 = vadd.f32 %v239, %v225
    %v241 = vadd.f32 %v240, %v226
    %v242 = vadd.f32 %v241, %v227
    %v243 = vadd.f32 %v242, %v228
    %v244 = vadd.f32 %v243, %v229
    %v245 = vadd.f32 %v244, %v230
    %v246 = vrot.slane %v245, 4
    %v247 = vadd.f32 %v245, %v246
    %v248 = vrot.slane %v247, 2
    %v249 = vadd.f32 %v247, %v248
    %v250 = vrot.slane %v249, 1
    %v251 = vadd.f32 %v249, %v250
    %v252 = vadd.f32 %v214, %v251
    %253 = vst [vmem:[#allocation4] sm:$0x1] %v252
    // Predicated region
    $region22: #{tpu_custom_call.1} parent=1 // pred_check
      %p254 = pneg %p22
    $region23: #{tpu_custom_call.1} parent=1 // pred_check_branch
      %256 = sbr.rel (%p254) target = $region25
    $region24: #{tpu_custom_call.1} parent=1 // pred_region
      %v257 = vld [vmem:[#allocation2] sm:$0x1]
      %v258 = vmul.f32 %v257, 0.0078125
      %v259 = vld [vmem:[#allocation4] sm:$0x1]
      %v260 = vmul.f32 %v259, 0.0078125
      %v261 = vmul.f32 %v258, %v258
      %v262 = vsub.f32 %v260, %v261
      %v263 = vmax.f32 %v262, 0.0
      %v264 = vld [vmem:[%s2] sm:$0x1]
      %v265 = vadd.f32 %v263, 1e-05
      %v266 = vrsqrt.pop %v265
      %v267 = vmul.f32 %v266, %v265
      %v268 = vmul.f32 %v267, %v266
      %v269 = vmul.f32 0.5, %v268
      %v270 = vsub.f32 1.5, %v269
      %v271 = vmul.f32 %v266, %v270
      %vm272 = vweird.f32 %v265
      %vm273 = vweird.f32 %v266
      %vm274 = vmor %vm272, %vm273
      %v275 = vsel %vm274, %v266, %v271
      %v276 = vmul.f32 %v264, %v275
      %277 = vst [vmem:[#allocation2] sm:$0x1] %v276
      %v278 = vld [vmem:[%s3] sm:$0x1]
      %v279 = vmul.f32 %v258, %v276
      %v280 = vsub.f32 %v278, %v279
      %281 = vst [vmem:[#allocation4] sm:$0x1] %v280
    $region25: #{tpu_custom_call.1} parent=1 // pred_fallthru
      _
    // Predicated region
    $region26: #{tpu_custom_call.1} parent=1 // pred_check
      _
    $region27: #{tpu_custom_call.1} parent=1 // pred_check_branch
      %283 = sbr.rel (0) target = $region29
    $region28: #{tpu_custom_call.1} parent=1 // pred_region
      %285 = vsyncadd [#allocation3], 0
      %s287 = sshll.u32 [#allocation2], 4
      %s288 = int_to_ptr.vmem [resolvable:$true] %s287
      %s289 = sshll.u32 %s4, 4
      %s290 = int_to_ptr.hbm [resolvable:$true] %s289
      %292 = dma.vmem_to_hbm [thread:$0]  %s288, 16, %s290, [#allocation3]
    $region29: #{tpu_custom_call.1} parent=1 // pred_fallthru
      _
    // Predicated region
    $region30: #{tpu_custom_call.1} parent=1 // pred_check
      _
    $region31: #{tpu_custom_call.1} parent=1 // pred_check_branch
      %294 = sbr.rel (0) target = $region33
    $region32: #{tpu_custom_call.1} parent=1 // pred_region
      %296 = vsyncadd [#allocation5], 0
      %s298 = sshll.u32 [#allocation4], 4
      %s299 = int_to_ptr.vmem [resolvable:$true] %s298
      %s300 = sshll.u32 %s5, 4
      %s301 = int_to_ptr.hbm [resolvable:$true] %s300
      %303 = dma.vmem_to_hbm [thread:$0]  %s299, 16, %s301, [#allocation5]
    $region33: #{tpu_custom_call.1} parent=1 // pred_fallthru
      _
    // Predicated region
    $region34: #{tpu_custom_call.1} parent=1 // pred_check
      _
    $region35: #{tpu_custom_call.1} parent=1 // pred_check_branch
      %305 = sbr.rel (0) target = $region37
    $region36: #{tpu_custom_call.1} parent=1 // pred_region
      %307 = dma.done [#allocation3], 16
    $region37: #{tpu_custom_call.1} parent=1 // pred_fallthru
      _
    // Predicated region
    $region38: #{tpu_custom_call.1} parent=1 // pred_check
      _
    $region39: #{tpu_custom_call.1} parent=1 // pred_check_branch
      %309 = sbr.rel (0) target = $region41
    $region40: #{tpu_custom_call.1} parent=1 // pred_region
      %311 = dma.done [#allocation5], 16
    $region41: #{tpu_custom_call.1} parent=1 // pred_fallthru
      _
    %312 = vsyncpa [#allocation3], 1
    %313 = vsyncpa [#allocation5], 1

</llo_original>
